<compile_context>
chip_gen: v7x
topology: tpu7x:2x2x1
jax: 0.10.0
libtpu: 0.0.40
codegen_flags: <defaults>
</compile_context>

<pallas_src>
import functools

import jax
import jax.numpy as jnp
from jax.experimental import pallas as pl
from jax.experimental.pallas import tpu as pltpu

INPUT_SIZE = 784
HIDDEN = 50
NUM_CLASSES = 10

# Padded sizes: hidden 50 -> 64 (full-dim blocks keep the (8,128) rule while
# only inflating w1 traffic 1.28x instead of 2.56x); logits 10 -> 128 so the
# in-kernel output store is a lane-dense, unmasked vst.
HIDDEN_PAD = 64
OUT_PAD = 128


def _round_up(x, m):
    return (x + m - 1) // m * m


def _sublane(dtype):
    # Sub-32-bit dtypes pack 2x along sublanes -> tile batch in multiples of 16.
    return 16 if jnp.dtype(dtype).itemsize == 2 else 8


def prepare_params(w1, b1, w2, b2, *, weights_dtype=jnp.float32):
    """Pad/cast parameters ONCE at init (hoisted out of the per-call hot path).

    w1: (784, 50), b1: (1, 50) or (50,), w2: (50, 10), b2: (1, 10) or (10,).
    Returns (w1p, b1p, w2p, b2p) with zero padding (contributes nothing).
    Biases stay f32 (bias + ReLU run in f32 on the VPU on every generation).
    """
    w1p = jnp.pad(w1.astype(weights_dtype), ((0, 0), (0, HIDDEN_PAD - HIDDEN)))
    b1p = jnp.pad(jnp.reshape(b1, (1, HIDDEN)).astype(jnp.float32),
                  ((0, 0), (0, HIDDEN_PAD - HIDDEN)))
    w2p = jnp.pad(w2.astype(weights_dtype),
                  ((0, HIDDEN_PAD - HIDDEN), (0, OUT_PAD - NUM_CLASSES)))
    b2p = jnp.pad(jnp.reshape(b2, (1, NUM_CLASSES)).astype(jnp.float32),
                  ((0, 0), (0, OUT_PAD - NUM_CLASSES)))
    return w1p, b1p, w2p, b2p


def mlp_kernel(x_ref, w1_ref, b1_ref, w2_ref, b2_ref, o_ref):
    # fc1: (tb, 784) @ (784, 64) on the MXU, f32 accumulate. If x/w1 are bf16
    # the DMAs stream bf16 but accumulation stays f32.
    h = jnp.dot(x_ref[...].astype(w1_ref.dtype), w1_ref[...],
                preferred_element_type=jnp.float32)
    # Bias + ReLU in f32 on the VPU (v5e has no bf16 VPU path).
    h = jnp.maximum(h + b1_ref[...], 0.0)
    # fc2: (tb, 64) @ (64, 128) on the MXU, f32 accumulate.
    out = jnp.dot(h.astype(w2_ref.dtype), w2_ref[...],
                  preferred_element_type=jnp.float32)
    o_ref[...] = (out + b2_ref[...]).astype(o_ref.dtype)


def _batch_tile(B, block_b, sublane):
    """Largest tile <= block_b, but always >= 2 grid steps when B permits."""
    tb = min(block_b, _round_up(B, sublane))
    if B > sublane and pl.cdiv(B, tb) < 2:
        # Split the batch so v7x's 2nd TensorCore gets a parallel tile.
        tb = min(tb, _round_up(pl.cdiv(B, 2), sublane))
    return tb


@functools.partial(jax.jit, static_argnames=("block_b", "return_padded"))
def nn_forward(x, w1p, b1p, w2p, b2p, *, block_b=512, return_padded=True):
    """x: (B, 784) f32 or bf16. Padded params from prepare_params().

    Returns (B, 128) padded logits by default (columns >= 10 are exactly 0);
    set return_padded=False to get (B, 10). Prefer consuming the padded form
    downstream to avoid an extra HBM copy.
    """
    B = x.shape[0]
    tb = _batch_tile(B, block_b, _sublane(x.dtype))
    grid = (pl.cdiv(B, tb),)

    # Advisory cost hint (weights counted once: constant index_map -> resident).
    flops = 2 * B * (INPUT_SIZE * HIDDEN_PAD + HIDDEN_PAD * OUT_PAD)
    bytes_accessed = (x.size * x.dtype.itemsize
                      + w1p.size * w1p.dtype.itemsize + b1p.size * 4
                      + w2p.size * w2p.dtype.itemsize + b2p.size * 4
                      + B * OUT_PAD * 4)

    out_padded = pl.pallas_call(
        mlp_kernel,
        out_shape=jax.ShapeDtypeStruct((B, OUT_PAD), jnp.float32),
        grid=grid,
        in_specs=[
            # x: tiled over batch, default double-buffered.
            pl.BlockSpec((tb, INPUT_SIZE), lambda i: (i, 0)),
            # Weights/biases: constant index_map -> resident, DMA'd once.
            pl.BlockSpec((INPUT_SIZE, HIDDEN_PAD), lambda i: (0, 0)),
            pl.BlockSpec((1, HIDDEN_PAD), lambda i: (0, 0)),
            pl.BlockSpec((HIDDEN_PAD, OUT_PAD), lambda i: (0, 0)),
            pl.BlockSpec((1, OUT_PAD), lambda i: (0, 0)),
        ],
        out_specs=pl.BlockSpec((tb, OUT_PAD), lambda i: (i, 0)),
        compiler_params=pltpu.CompilerParams(
            dimension_semantics=("parallel",),
        ),
        cost_estimate=pl.CostEstimate(
            flops=flops, transcendentals=0, bytes_accessed=bytes_accessed),
    )(x, w1p, b1p, w2p, b2p)

    if return_padded:
        return out_padded
    return out_padded[:, :NUM_CLASSES]


def init_params(key):
    # Deterministic init mimicking nn.Linear's uniform(-1/sqrt(fan_in), 1/sqrt(fan_in)).
    k1, k2, k3, k4 = jax.random.split(key, 4)
    bound1 = 1.0 / (INPUT_SIZE ** 0.5)
    bound2 = 1.0 / (HIDDEN ** 0.5)
    w1 = jax.random.uniform(k1, (INPUT_SIZE, HIDDEN), jnp.float32, -bound1, bound1)
    b1 = jax.random.uniform(k2, (1, HIDDEN), jnp.float32, -bound1, bound1)
    w2 = jax.random.uniform(k3, (HIDDEN, NUM_CLASSES), jnp.float32, -bound2, bound2)
    b2 = jax.random.uniform(k4, (1, NUM_CLASSES), jnp.float32, -bound2, bound2)
    return w1, b1, w2, b2


if __name__ == "__main__":
    key = jax.random.PRNGKey(0)
    kx, kp = jax.random.split(key)

    # Batch matching the module spec: 64 samples of 1x28x28, flattened to 784.
    B = 64
    x_img = jax.random.normal(kx, (B, 1, 28, 28), jnp.float32)
    x = x_img.reshape(B, INPUT_SIZE)  # flatten in plain JAX

    w1, b1, w2, b2 = init_params(kp)

    # Pure-JAX reference.
    ref = jnp.maximum(x @ w1 + b1, 0.0) @ w2 + b2

    # f32 path: pad params once, run, exact-match check on the real 10 classes.
    params_f32 = prepare_params(w1, b1, w2, b2)
    out_padded = jax.block_until_ready(nn_forward(x, *params_f32))
    assert out_padded.shape == (B, OUT_PAD)
    assert jnp.all(out_padded[:, NUM_CLASSES:] == 0.0)  # pad columns exactly zero
    logits = out_padded[:, :NUM_CLASSES]
    assert logits.shape == (B, NUM_CLASSES)
    assert jnp.allclose(logits, ref, atol=1e-4, rtol=1e-4)

    # bf16 weights + bf16 activations (halved x and weight HBM traffic on
    # v6e/v7x); NOTE: hidden activations are also quantized to bf16 at the fc2
    # MXU input, hence the looser tolerance.
    params_bf16 = prepare_params(w1, b1, w2, b2, weights_dtype=jnp.bfloat16)
    out_bf16 = jax.block_until_ready(
        nn_forward(x.astype(jnp.bfloat16), *params_bf16, return_padded=False))
    assert out_bf16.shape == (B, NUM_CLASSES)
    assert jnp.allclose(out_bf16, ref, atol=5e-2, rtol=5e-2)

    print("KERNEL_OK")
</pallas_src>

<mosaic_0001>
module attributes {stable_mosaic.version = 11 : i64} {
  func.func @mlp_kernel(%arg0: i32, %arg1: memref<32x784xf32, #tpu.memory_space<vmem>>, %arg2: memref<784x64xf32, #tpu.memory_space<vmem>>, %arg3: memref<1x64xf32, #tpu.memory_space<vmem>>, %arg4: memref<64x128xf32, #tpu.memory_space<vmem>>, %arg5: memref<1x128xf32, #tpu.memory_space<vmem>>, %arg6: memref<32x128xf32, #tpu.memory_space<vmem>>) attributes {dimension_semantics = [#tpu.dimension_semantics<parallel>], iteration_bounds = array<i64: 2>, scalar_prefetch = 0 : i64, scratch_operands = 0 : i64, tpu.core_type = #tpu.core_type<tc>, window_params = [{transform_indices = @transform_0, window_bounds = array<i64: 32, 784>}, {pipeline_mode = #tpu.pipeline_mode<synchronous>, transform_indices = @transform_1, window_bounds = array<i64: 784, 64>}, {pipeline_mode = #tpu.pipeline_mode<synchronous>, transform_indices = @transform_2, window_bounds = array<i64: 1, 64>}, {pipeline_mode = #tpu.pipeline_mode<synchronous>, transform_indices = @transform_3, window_bounds = array<i64: 64, 128>}, {pipeline_mode = #tpu.pipeline_mode<synchronous>, transform_indices = @transform_4, window_bounds = array<i64: 1, 128>}, {transform_indices = @transform_5, window_bounds = array<i64: 32, 128>}]} {
    %c0 = arith.constant 0 : index
    %c0_0 = arith.constant 0 : index
    %0 = vector.load %arg1[%c0, %c0_0] : memref<32x784xf32, #tpu.memory_space<vmem>>, vector<32x784xf32>
    %c0_1 = arith.constant 0 : index
    %c0_2 = arith.constant 0 : index
    %1 = vector.load %arg2[%c0_1, %c0_2] : memref<784x64xf32, #tpu.memory_space<vmem>>, vector<784x64xf32>
    %cst = arith.constant dense<0.000000e+00> : vector<32x64xf32>
    %2 = tpu.matmul %0, %1, %cst {dimension_numbers = #tpu.dot_dimension_numbers<[1], [0], [0], [1], [0, 0, 1, 1], [], []>} : vector<32x784xf32>, vector<784x64xf32>, vector<32x64xf32> -> vector<32x64xf32>
    %c0_3 = arith.constant 0 : index
    %c0_4 = arith.constant 0 : index
    %3 = vector.load %arg3[%c0_3, %c0_4] : memref<1x64xf32, #tpu.memory_space<vmem>>, vector<1x64xf32>
    %4 = vector.broadcast %3 : vector<1x64xf32> to vector<32x64xf32>
    %5 = arith.addf %2, %4 : vector<32x64xf32>
    %cst_5 = arith.constant 0.000000e+00 : f32
    %6 = vector.broadcast %cst_5 : f32 to vector<32x64xf32>
    %7 = arith.maximumf %5, %6 : vector<32x64xf32>
    %c0_6 = arith.constant 0 : index
    %c0_7 = arith.constant 0 : index
    %8 = vector.load %arg4[%c0_6, %c0_7] : memref<64x128xf32, #tpu.memory_space<vmem>>, vector<64x128xf32>
    %cst_8 = arith.constant dense<0.000000e+00> : vector<32x128xf32>
    %9 = tpu.matmul %7, %8, %cst_8 {dimension_numbers = #tpu.dot_dimension_numbers<[1], [0], [0], [1], [0, 0, 1, 1], [], []>} : vector<32x64xf32>, vector<64x128xf32>, vector<32x128xf32> -> vector<32x128xf32>
    %c0_9 = arith.constant 0 : index
    %c0_10 = arith.constant 0 : index
    %10 = vector.load %arg5[%c0_9, %c0_10] : memref<1x128xf32, #tpu.memory_space<vmem>>, vector<1x128xf32>
    %11 = vector.broadcast %10 : vector<1x128xf32> to vector<32x128xf32>
    %12 = arith.addf %9, %11 : vector<32x128xf32>
    %c0_11 = arith.constant 0 : index
    %c0_12 = arith.constant 0 : index
    %13 = vector.load %arg6[%c0_11, %c0_12] : memref<32x128xf32, #tpu.memory_space<vmem>>, vector<32x128xf32>
    tpu.vector_store %arg6[%c0_11, %c0_12], %12 {strides = array<i32>} : memref<32x128xf32, #tpu.memory_space<vmem>>, vector<32x128xf32>,
    return
  }
  func.func @transform_0(%arg0: i32) -> (i32, i32) {
    %c0_i32 = arith.constant 0 : i32
    %c0_i32_0 = arith.constant 0 : i32
    return %arg0, %c0_i32 : i32, i32
  }
  func.func @transform_1(%arg0: i32) -> (i32, i32) {
    %c0_i32 = arith.constant 0 : i32
    %c0_i32_0 = arith.constant 0 : i32
    %c0_i32_1 = arith.constant 0 : i32
    return %c0_i32, %c0_i32_0 : i32, i32
  }
  func.func @transform_2(%arg0: i32) -> (i32, i32) {
    %c0_i32 = arith.constant 0 : i32
    %c0_i32_0 = arith.constant 0 : i32
    %c0_i32_1 = arith.constant 0 : i32
    return %c0_i32, %c0_i32_0 : i32, i32
  }
  func.func @transform_3(%arg0: i32) -> (i32, i32) {
    %c0_i32 = arith.constant 0 : i32
    %c0_i32_0 = arith.constant 0 : i32
    %c0_i32_1 = arith.constant 0 : i32
    return %c0_i32, %c0_i32_0 : i32, i32
  }
  func.func @transform_4(%arg0: i32) -> (i32, i32) {
    %c0_i32 = arith.constant 0 : i32
    %c0_i32_0 = arith.constant 0 : i32
    %c0_i32_1 = arith.constant 0 : i32
    return %c0_i32, %c0_i32_0 : i32, i32
  }
  func.func @transform_5(%arg0: i32) -> (i32, i32) {
    %c0_i32 = arith.constant 0 : i32
    %c0_i32_0 = arith.constant 0 : i32
    return %arg0, %c0_i32 : i32, i32
  }
}

</mosaic_0001>

<llo_original>
// kernel: nn_forward.1
$region0: #{nn_forward.1}
  #allocation0 [shape = 'u32[]', space=smem, size = 0x4, offset = 0x4, fixed_abs, tag = 'smem constant byte address 0x4 - core index']
  #allocation1 [shape = 'u32[144,128]{1,0:T(1,128)}', space=vmem, size = 0x12000, scoped, tag = 'internal scratch']
  %s0 = inlined_call_operand.vmem [shape: f32[64,784], index: 0, kind: input, shape index: {}]
  %s1 = inlined_call_operand.vmem [shape: f32[784,64], index: 1, kind: input, shape index: {}]
  %s2 = inlined_call_operand.vmem [shape: f32[1,64], index: 2, kind: input, shape index: {}]
  %s3 = inlined_call_operand.vmem [shape: f32[64,128], index: 3, kind: input, shape index: {}]
  %s4 = inlined_call_operand.vmem [shape: f32[1,128], index: 4, kind: input, shape index: {}]
  %s5 = inlined_call_operand.hbm [shape: f32[64,128], index: 5, kind: output, shape index: {}]
  %s6 = sld [smem:[#allocation0]]
  $region53: #{nn_forward.1} parent=0
    _
  %s8 = ssub.s32 1, %s6
  %s9 = scalar_select 0, %s8, %s6
  $region1: #{nn_forward.1} parent=0
    #allocation2 [shape = 'u8[32768]{0}', space=vmem, size = 0x8000, scoped, tag = 'output window, operand 0']
    #allocation3 [shape = 's32[2]{0}', space=sflag, size = 0x8, scoped, tag = 'scoped memory for nn_forward.1']
    %10 = vsyncpa [#allocation3], 0
    %s11 = scalar_lea.sflag [#allocation3], 1
    %12 = vsyncpa %s11, 0
    loop: start=0, step=1, limit=4
    $region2: #{nn_forward.1} parent=1 // loop_pre_header
      _
    $region3: #{nn_forward.1} parent=1 // loop_header
      %s14 = sphi 0, %s18
      %p15 = scmp.ge.s32.totalorder %s14, 4
      %s24 = sphi 0, %s26
      %s27 = sphi 0, %s24
      %s28 = sphi 0, %s27
      %s44 = sphi 0, %s28
      %s48 = sphi 0, %s48
      %s50 = sphi 0, %s48
      %s51 = sphi 0, %s50
      %s65 = sphi 0, %s51
      %s69 = sphi 0, %s69
      %s71 = sphi 0, %s69
      %s72 = sphi 0, %s71
      %s86 = sphi 0, %s72
      %s90 = sphi 0, %s90
      %s92 = sphi 0, %s90
      %s93 = sphi 0, %s92
      %s107 = sphi 0, %s93
      %s111 = sphi 0, %s111
      %s113 = sphi 0, %s111
      %s114 = sphi 0, %s113
      %s128 = sphi 0, %s114
      %s134 = sphi 0, %s136
      %s137 = sphi 0, %s134
      %s138 = sphi 0, %s137
      %s154 = sphi 0, %s138
    $region4: #{nn_forward.1} parent=1 // loop_header_branch
      %17 = sbr.rel (%p15) target = $region8
    $region5: #{nn_forward.1} parent=1 // loop_body
      %s19 = ssub.s32 %s14, 1
      %s20 = ssub.s32 %s14, 2
      %s21 = sadd.s32 %s14, 1
      %s22 = ssub.s32 %s14, %s21
      %p23 = scmp.eq.s32.totalorder %s22, 0
      %s25 = sadd.s32 %s24, 1
      %s26 = scalar_select %p23, %s24, %s25
      %p29 = pneg %p23
      %p30 = scmp.eq.s32.totalorder %s14, 1
      %p31 = por %p29, %p30
      %p32 = scmp.ne.s32.totalorder %s24, %s27
      %p33 = scmp.eq.s32.totalorder %s14, 0
      %p34 = por %p32, %p33
      %p35 = scmp.ne.s32.totalorder %s24, %s27
      %p36 = scmp.eq.s32.totalorder %s19, 1
      %p37 = por %p35, %p36
      %p38 = scmp.ne.s32.totalorder %s27, %s28
      %p39 = scmp.eq.s32.totalorder %s19, 0
      %p40 = por %p38, %p39
      %p41 = scmp.ne.s32.totalorder %s27, %s28
      %p42 = scmp.eq.s32.totalorder %s20, 1
      %p43 = por %p41, %p42
      %p45 = scmp.ne.s32.totalorder %s28, %s44
      %p46 = scmp.eq.s32.totalorder %s20, 0
      %p47 = por %p45, %p46
      %s49 = sadd.s32 %s48, 1
      %p52 = scmp.eq.s32.totalorder %s14, 1
      %p53 = scmp.ne.s32.totalorder %s48, %s50
      %p54 = scmp.eq.s32.totalorder %s14, 0
      %p55 = por %p53, %p54
      %p56 = scmp.ne.s32.totalorder %s48, %s50
      %p57 = scmp.eq.s32.totalorder %s19, 1
      %p58 = por %p56, %p57
      %p59 = scmp.ne.s32.totalorder %s50, %s51
      %p60 = scmp.eq.s32.totalorder %s19, 0
      %p61 = por %p59, %p60
      %p62 = scmp.ne.s32.totalorder %s50, %s51
      %p63 = scmp.eq.s32.totalorder %s20, 1
      %p64 = por %p62, %p63
      %p66 = scmp.ne.s32.totalorder %s51, %s65
      %p67 = scmp.eq.s32.totalorder %s20, 0
      %p68 = por %p66, %p67
      %s70 = sadd.s32 %s69, 1
      %p73 = scmp.eq.s32.totalorder %s14, 1
      %p74 = scmp.ne.s32.totalorder %s69, %s71
      %p75 = scmp.eq.s32.totalorder %s14, 0
      %p76 = por %p74, %p75
      %p77 = scmp.ne.s32.totalorder %s69, %s71
      %p78 = scmp.eq.s32.totalorder %s19, 1
      %p79 = por %p77, %p78
      %p80 = scmp.ne.s32.totalorder %s71, %s72
      %p81 = scmp.eq.s32.totalorder %s19, 0
      %p82 = por %p80, %p81
      %p83 = scmp.ne.s32.totalorder %s71, %s72
      %p84 = scmp.eq.s32.totalorder %s20, 1
      %p85 = por %p83, %p84
      %p87 = scmp.ne.s32.totalorder %s72, %s86
      %p88 = scmp.eq.s32.totalorder %s20, 0
      %p89 = por %p87, %p88
      %s91 = sadd.s32 %s90, 1
      %p94 = scmp.eq.s32.totalorder %s14, 1
      %p95 = scmp.ne.s32.totalorder %s90, %s92
      %p96 = scmp.eq.s32.totalorder %s14, 0
      %p97 = por %p95, %p96
      %p98 = scmp.ne.s32.totalorder %s90, %s92
      %p99 = scmp.eq.s32.totalorder %s19, 1
      %p100 = por %p98, %p99
      %p101 = scmp.ne.s32.totalorder %s92, %s93
      %p102 = scmp.eq.s32.totalorder %s19, 0
      %p103 = por %p101, %p102
      %p104 = scmp.ne.s32.totalorder %s92, %s93
      %p105 = scmp.eq.s32.totalorder %s20, 1
      %p106 = por %p104, %p105
      %p108 = scmp.ne.s32.totalorder %s93, %s107
      %p109 = scmp.eq.s32.totalorder %s20, 0
      %p110 = por %p108, %p109
      %s112 = sadd.s32 %s111, 1
      %p115 = scmp.eq.s32.totalorder %s14, 1
      %p116 = scmp.ne.s32.totalorder %s111, %s113
      %p117 = scmp.eq.s32.totalorder %s14, 0
      %p118 = por %p116, %p117
      %p119 = scmp.ne.s32.totalorder %s111, %s113
      %p120 = scmp.eq.s32.totalorder %s19, 1
      %p121 = por %p119, %p120
      %p122 = scmp.ne.s32.totalorder %s113, %s114
      %p123 = scmp.eq.s32.totalorder %s19, 0
      %p124 = por %p122, %p123
      %p125 = scmp.ne.s32.totalorder %s113, %s114
      %p126 = scmp.eq.s32.totalorder %s20, 1
      %p127 = por %p125, %p126
      %p129 = scmp.ne.s32.totalorder %s114, %s128
      %p130 = scmp.eq.s32.totalorder %s20, 0
      %p131 = por %p129, %p130
      %s132 = ssub.s32 %s14, %s21
      %p133 = scmp.eq.s32.totalorder %s132, 0
      %s135 = sadd.s32 %s134, 1
      %s136 = scalar_select %p133, %s134, %s135
      %p139 = pneg %p133
      %p140 = scmp.eq.s32.totalorder %s14, 1
      %p141 = por %p139, %p140
      %p142 = scmp.ne.s32.totalorder %s134, %s137
      %p143 = scmp.eq.s32.totalorder %s14, 0
      %p144 = por %p142, %p143
      %p145 = scmp.ne.s32.totalorder %s134, %s137
      %p146 = scmp.eq.s32.totalorder %s19, 1
      %p147 = por %p145, %p146
      %p148 = scmp.ne.s32.totalorder %s137, %s138
      %p149 = scmp.eq.s32.totalorder %s19, 0
      %p150 = por %p148, %p149
      %p151 = scmp.ne.s32.totalorder %s137, %s138
      %p152 = scmp.eq.s32.totalorder %s20, 1
      %p153 = por %p151, %p152
      %p155 = scmp.ne.s32.totalorder %s138, %s154
      %p156 = scmp.eq.s32.totalorder %s20, 0
      %p157 = por %p155, %p156
      %p158 = scmp.le.s32.totalorder 1, %s14
      %p159 = scmp.lt.s32.totalorder %s14, 3
      %p160 = pnand %p158, %p159
      %p161 = pneg %p160
      // Predicated region
      $region9: #{nn_forward.1} parent=5 // pred_check
        _
      $region10: #{nn_forward.1} parent=5 // pred_check_branch
        %163 = sbr.rel (%p160) target = $region12
      $region11: #{nn_forward.1} parent=5 // pred_region
        %s164 = ssub.s32 %s14, 1
        // Predicated region
        $region13: #{nn_forward.1} parent=11 // pred_check
          %p165 = pneg %p61
        $region14: #{nn_forward.1} parent=11 // pred_check_branch
          %167 = sbr.rel (%p165) target = $region16
        $region15: #{nn_forward.1} parent=11 // pred_region
          _
        $region16: #{nn_forward.1} parent=11 // pred_fallthru
          _
        // Predicated region
        $region17: #{nn_forward.1} parent=11 // pred_check
          %p168 = pneg %p82
        $region18: #{nn_forward.1} parent=11 // pred_check_branch
          %170 = sbr.rel (%p168) target = $region20
        $region19: #{nn_forward.1} parent=11 // pred_region
          _
        $region20: #{nn_forward.1} parent=11 // pred_fallthru
          _
        // Predicated region
        $region21: #{nn_forward.1} parent=11 // pred_check
          %p171 = pneg %p103
        $region22: #{nn_forward.1} parent=11 // pred_check_branch
          %173 = sbr.rel (%p171) target = $region24
        $region23: #{nn_forward.1} parent=11 // pred_region
          _
        $region24: #{nn_forward.1} parent=11 // pred_fallthru
          _
        // Predicated region
        $region25: #{nn_forward.1} parent=11 // pred_check
          %p174 = pneg %p124
        $region26: #{nn_forward.1} parent=11 // pred_check_branch
          %176 = sbr.rel (%p174) target = $region28
        $region27: #{nn_forward.1} parent=11 // pred_region
          _
        $region28: #{nn_forward.1} parent=11 // pred_fallthru
          _
      $region12: #{nn_forward.1} parent=5 // pred_fallthru
        _
      %p177 = scmp.lt.s32.totalorder %s14, 2
      // Predicated region
      $region29: #{nn_forward.1} parent=5 // pred_check
        %p178 = pneg %p177
      $region30: #{nn_forward.1} parent=5 // pred_check_branch
        %180 = sbr.rel (%p178) target = $region32
      $region31: #{nn_forward.1} parent=5 // pred_region
        // Predicated region
        $region33: #{nn_forward.1} parent=31 // pred_check
          %p181 = pneg %p34
        $region34: #{nn_forward.1} parent=31 // pred_check_branch
          %183 = sbr.rel (%p181) target = $region36
        $region35: #{nn_forward.1} parent=31 // pred_region
          %s184 = smul.u32 4, %s14
          %p185 = scmp.lt.s32.totalorder %s184, 7
          %s186 = scalar_select %p185, %s184, 7
          %s187 = smul.addr %s186, 7
          %s188 = smul.addr %s187, 8
          %s189 = scalar_lea.vmem %s0, %s188
          %s190 = smul.u32 4, %s14
        $region36: #{nn_forward.1} parent=31 // pred_fallthru
          _
      $region32: #{nn_forward.1} parent=5 // pred_fallthru
        _
      %p191 = scmp.le.s32.totalorder 1, %s14
      %p192 = scmp.lt.s32.totalorder %s14, 3
      %p193 = pnand %p191, %p192
      %p194 = pneg %p193
      // Predicated region
      $region37: #{nn_forward.1} parent=5 // pred_check
        _
      $region38: #{nn_forward.1} parent=5 // pred_check_branch
        %196 = sbr.rel (%p193) target = $region40
      $region39: #{nn_forward.1} parent=5 // pred_region
        %s197 = ssub.s32 %s14, 1
        %s198 = smul.u32 4, %s19
        %p199 = scmp.lt.s32.totalorder %s198, 7
        %s200 = scalar_select %p199, %s198, 7
        %s201 = smul.addr %s200, 7
        %s202 = smul.addr %s201, 8
        %s203 = scalar_lea.vmem %s0, %s202
        %p204 = pneg %p40
        %p205 = pneg %p37
        %p206 = pneg %p61
        %p207 = pneg %p58
        %p208 = pneg %p82
        %p209 = pneg %p79
        %p210 = pneg %p103
        %p211 = pneg %p100
        %p212 = pneg %p124
        %p213 = pneg %p121
        %p214 = pneg %p150
        %p215 = pneg %p147
        %s216 = sand.u32 %s137, 1
        %s217 = scalar_lea.sflag [#allocation3], %s216
        %s218 = sand.u32 %s137, 1
        %s219 = smul.addr %s218, 32
        %s220 = scalar_lea.vmem [#allocation2], %s219
        %s221 = smul.u32 4, %s19
        %p222 = scmp.lt.s32.totalorder %s221, 7
        %s223 = scalar_select %p222, %s221, 7
        %s224 = smul.addr %s223, 7
        %s225 = smul.addr %s224, 8
        %s226 = scalar_lea.vmem %s0, %s225
        %s227 = smul.u32 4, %s19
        %s228 = smul.u32 4, %s19
        %v229 = vld [vmem:[%s226] sm:$0xff]
        %v230 = vld [vmem:[%s226 + $0x8] sm:$0xff]
        %v231 = vld [vmem:[%s226 + $0x10] sm:$0xff]
        %v232 = vld [vmem:[%s226 + $0x18] sm:$0xff]
        %v233 = vld [vmem:[%s226 + $0x20] sm:$0xff]
        %v234 = vld [vmem:[%s226 + $0x28] sm:$0xff]
        %v235 = vld [vmem:[%s226 + $0x30] sm:$0xff]
        %v236 = vld [vmem:[%s226 + $0x38] sm:$0xff]
        %v237 = vld [vmem:[%s226 + $0x40] sm:$0xff]
        %v238 = vld [vmem:[%s226 + $0x48] sm:$0xff]
        %v239 = vld [vmem:[%s226 + $0x50] sm:$0xff]
        %v240 = vld [vmem:[%s226 + $0x58] sm:$0xff]
        %v241 = vld [vmem:[%s226 + $0x60] sm:$0xff]
        %v242 = vld [vmem:[%s226 + $0x68] sm:$0xff]
        %v243 = vld [vmem:[%s226 + $0x70] sm:$0xff]
        %v244 = vld [vmem:[%s226 + $0x78] sm:$0xff]
        %v245 = vld [vmem:[%s226 + $0x80] sm:$0xff]
        %v246 = vld [vmem:[%s226 + $0x88] sm:$0xff]
        %v247 = vld [vmem:[%s226 + $0x90] sm:$0xff]
        %v248 = vld [vmem:[%s226 + $0x98] sm:$0xff]
        %v249 = vld [vmem:[%s226 + $0xa0] sm:$0xff]
        %v250 = vld [vmem:[%s226 + $0xa8] sm:$0xff]
        %v251 = vld [vmem:[%s226 + $0xb0] sm:$0xff]
        %v252 = vld [vmem:[%s226 + $0xb8] sm:$0xff]
        %v253 = vld [vmem:[%s226 + $0xc0] sm:$0xff]
        %v254 = vld [vmem:[%s226 + $0xc8] sm:$0xff]
        %v255 = vld [vmem:[%s226 + $0xd0] sm:$0xff]
        %v256 = vld [vmem:[%s226 + $0xd8] sm:$0xff]
        %v257 = vld [vmem:[%s1] sm:$0xff]
        %v258 = vld [vmem:[%s1 + $0x8] sm:$0xff]
        %v259 = vld [vmem:[%s1 + $0x10] sm:$0xff]
        %v260 = vld [vmem:[%s1 + $0x18] sm:$0xff]
        %v261 = vld [vmem:[%s1 + $0x20] sm:$0xff]
        %v262 = vld [vmem:[%s1 + $0x28] sm:$0xff]
        %v263 = vld [vmem:[%s1 + $0x30] sm:$0xff]
        %v264 = vld [vmem:[%s1 + $0x38] sm:$0xff]
        %v265 = vld [vmem:[%s1 + $0x40] sm:$0xff]
        %v266 = vld [vmem:[%s1 + $0x48] sm:$0xff]
        %v267 = vld [vmem:[%s1 + $0x50] sm:$0xff]
        %v268 = vld [vmem:[%s1 + $0x58] sm:$0xff]
        %v269 = vld [vmem:[%s1 + $0x60] sm:$0xff]
        %v270 = vld [vmem:[%s1 + $0x68] sm:$0xff]
        %v271 = vld [vmem:[%s1 + $0x70] sm:$0xff]
        %v272 = vld [vmem:[%s1 + $0x78] sm:$0xff]
        %v273 = vld [vmem:[%s1 + $0x80] sm:$0xff]
        %v274 = vld [vmem:[%s1 + $0x88] sm:$0xff]
        %v275 = vld [vmem:[%s1 + $0x90] sm:$0xff]
        %v276 = vld [vmem:[%s1 + $0x98] sm:$0xff]
        %v277 = vld [vmem:[%s1 + $0xa0] sm:$0xff]
        %v278 = vld [vmem:[%s1 + $0xa8] sm:$0xff]
        %v279 = vld [vmem:[%s1 + $0xb0] sm:$0xff]
        %v280 = vld [vmem:[%s1 + $0xb8] sm:$0xff]
        %v281 = vld [vmem:[%s1 + $0xc0] sm:$0xff]
        %v282 = vld [vmem:[%s1 + $0xc8] sm:$0xff]
        %v283 = vld [vmem:[%s1 + $0xd0] sm:$0xff]
        %v284 = vld [vmem:[%s1 + $0xd8] sm:$0xff]
        %v285 = vld [vmem:[%s1 + $0xe0] sm:$0xff]
        %v286 = vld [vmem:[%s1 + $0xe8] sm:$0xff]
        %v287 = vld [vmem:[%s1 + $0xf0] sm:$0xff]
        %v288 = vld [vmem:[%s1 + $0xf8] sm:$0xff]
        %v289 = vld [vmem:[%s1 + $0x100] sm:$0xff]
        %v290 = vld [vmem:[%s1 + $0x108] sm:$0xff]
        %v291 = vld [vmem:[%s1 + $0x110] sm:$0xff]
        %v292 = vld [vmem:[%s1 + $0x118] sm:$0xff]
        %v293 = vld [vmem:[%s1 + $0x120] sm:$0xff]
        %v294 = vld [vmem:[%s1 + $0x128] sm:$0xff]
        %v295 = vld [vmem:[%s1 + $0x130] sm:$0xff]
        %v296 = vld [vmem:[%s1 + $0x138] sm:$0xff]
        %v297 = vld [vmem:[%s1 + $0x140] sm:$0xff]
        %v298 = vld [vmem:[%s1 + $0x148] sm:$0xff]
        %v299 = vld [vmem:[%s1 + $0x150] sm:$0xff]
        %v300 = vld [vmem:[%s1 + $0x158] sm:$0xff]
        %v301 = vld [vmem:[%s1 + $0x160] sm:$0xff]
        %v302 = vld [vmem:[%s1 + $0x168] sm:$0xff]
        %v303 = vld [vmem:[%s1 + $0x170] sm:$0xff]
        %v304 = vld [vmem:[%s1 + $0x178] sm:$0xff]
        %v305 = vld [vmem:[%s1 + $0x180] sm:$0xff]
        %v306 = vld [vmem:[%s1 + $0x188] sm:$0xff]
        %v307 = vld [vmem:[%s1 + $0x190] sm:$0xff]
        %v308 = vld [vmem:[%s1 + $0x198] sm:$0xff]
        %v309 = vld [vmem:[%s1 + $0x1a0] sm:$0xff]
        %v310 = vld [vmem:[%s1 + $0x1a8] sm:$0xff]
        %v311 = vld [vmem:[%s1 + $0x1b0] sm:$0xff]
        %v312 = vld [vmem:[%s1 + $0x1b8] sm:$0xff]
        %v313 = vld [vmem:[%s1 + $0x1c0] sm:$0xff]
        %v314 = vld [vmem:[%s1 + $0x1c8] sm:$0xff]
        %v315 = vld [vmem:[%s1 + $0x1d0] sm:$0xff]
        %v316 = vld [vmem:[%s1 + $0x1d8] sm:$0xff]
        %v317 = vld [vmem:[%s1 + $0x1e0] sm:$0xff]
        %v318 = vld [vmem:[%s1 + $0x1e8] sm:$0xff]
        %v319 = vld [vmem:[%s1 + $0x1f0] sm:$0xff]
        %v320 = vld [vmem:[%s1 + $0x1f8] sm:$0xff]
        %v321 = vld [vmem:[%s1 + $0x200] sm:$0xff]
        %v322 = vld [vmem:[%s1 + $0x208] sm:$0xff]
        %v323 = vld [vmem:[%s1 + $0x210] sm:$0xff]
        %v324 = vld [vmem:[%s1 + $0x218] sm:$0xff]
        %v325 = vld [vmem:[%s1 + $0x220] sm:$0xff]
        %v326 = vld [vmem:[%s1 + $0x228] sm:$0xff]
        %v327 = vld [vmem:[%s1 + $0x230] sm:$0xff]
        %v328 = vld [vmem:[%s1 + $0x238] sm:$0xff]
        %v329 = vld [vmem:[%s1 + $0x240] sm:$0xff]
        %v330 = vld [vmem:[%s1 + $0x248] sm:$0xff]
        %v331 = vld [vmem:[%s1 + $0x250] sm:$0xff]
        %v332 = vld [vmem:[%s1 + $0x258] sm:$0xff]
        %v333 = vld [vmem:[%s1 + $0x260] sm:$0xff]
        %v334 = vld [vmem:[%s1 + $0x268] sm:$0xff]
        %v335 = vld [vmem:[%s1 + $0x270] sm:$0xff]
        %v336 = vld [vmem:[%s1 + $0x278] sm:$0xff]
        %v337 = vld [vmem:[%s1 + $0x280] sm:$0xff]
        %v338 = vld [vmem:[%s1 + $0x288] sm:$0xff]
        %v339 = vld [vmem:[%s1 + $0x290] sm:$0xff]
        %v340 = vld [vmem:[%s1 + $0x298] sm:$0xff]
        %v341 = vld [vmem:[%s1 + $0x2a0] sm:$0xff]
        %v342 = vld [vmem:[%s1 + $0x2a8] sm:$0xff]
        %v343 = vld [vmem:[%s1 + $0x2b0] sm:$0xff]
        %v344 = vld [vmem:[%s1 + $0x2b8] sm:$0xff]
        %v345 = vld [vmem:[%s1 + $0x2c0] sm:$0xff]
        %v346 = vld [vmem:[%s1 + $0x2c8] sm:$0xff]
        %v347 = vld [vmem:[%s1 + $0x2d0] sm:$0xff]
        %v348 = vld [vmem:[%s1 + $0x2d8] sm:$0xff]
        %v349 = vld [vmem:[%s1 + $0x2e0] sm:$0xff]
        %v350 = vld [vmem:[%s1 + $0x2e8] sm:$0xff]
        %v351 = vld [vmem:[%s1 + $0x2f0] sm:$0xff]
        %v352 = vld [vmem:[%s1 + $0x2f8] sm:$0xff]
        %v353 = vld [vmem:[%s1 + $0x300] sm:$0xff]
        %v354 = vld [vmem:[%s1 + $0x308] sm:$0xff]
        %v355 = vld [vmem:[%s2] sm:$0x1]
        %v357 = vlaneseq
        %v358 = vshrl.u32 %v357, 7
        %v359 = vsub.s32 0, %v358
        %v360 = vrot.slane %v355, %v359
        %vm362 = vcmask 130048
        %v364 = vsel %vm362, %v235, 0
        %v367 = vsel %vm362, %v242, 0
        %v370 = vsel %vm362, %v249, 0
        %v373 = vsel %vm362, %v256, 0
        %375 = vmatprep.subr.mxu0 0.0
        %376 = vmatpush1.msra.mxu0 %v257
        %377 = vmatprep.subr.mxu0 0.0
        %378 = vmatpush1.msra.mxu0 %v258
        %379 = vmatprep.subr.mxu0 0.0
        %380 = vmatpush1.msra.mxu0 %v259
        %381 = vmatprep.subr.mxu0 0.0
        %382 = vmatpush1.msra.mxu0 %v260
        %383 = vmatprep.subr.mxu0 0.0
        %384 = vmatpush1.msra.mxu0 %v261
        %385 = vmatprep.subr.mxu0 0.0
        %386 = vmatpush1.msra.mxu0 %v262
        %387 = vmatprep.subr.mxu0 0.0
        %388 = vmatpush1.msra.mxu0 %v263
        %389 = vmatprep.subr.mxu0 0.0
        %390 = vmatpush1.msra.mxu0 %v264
        %391 = vmatprep.subr.mxu0 0.0
        %392 = vmatpush1.msra.mxu0 %v265
        %393 = vmatprep.subr.mxu0 0.0
        %394 = vmatpush1.msra.mxu0 %v266
        %395 = vmatprep.subr.mxu0 0.0
        %396 = vmatpush1.msra.mxu0 %v267
        %397 = vmatprep.subr.mxu0 0.0
        %398 = vmatpush1.msra.mxu0 %v268
        %399 = vmatprep.subr.mxu0 0.0
        %400 = vmatpush1.msra.mxu0 %v269
        %401 = vmatprep.subr.mxu0 0.0
        %402 = vmatpush1.msra.mxu0 %v270
        %403 = vmatprep.subr.mxu0 0.0
        %404 = vmatpush1.msra.mxu0 %v271
        %405 = vmatprep.subr.mxu0 0.0
        %406 = vmatpush1.msra.mxu0 %v272
        %407 = vmatprep.subr.mxu0 0.0
        %408 = vmatpush1.msra.mxu0 %v273
        %409 = vmatprep.subr.mxu0 0.0
        %410 = vmatpush1.msra.mxu0 %v274
        %411 = vmatprep.subr.mxu0 0.0
        %412 = vmatpush1.msra.mxu0 %v275
        %413 = vmatprep.subr.mxu0 0.0
        %414 = vmatpush1.msra.mxu0 %v276
        %415 = vmatprep.subr.mxu0 0.0
        %416 = vmatpush1.msra.mxu0 %v277
        %417 = vmatprep.subr.mxu0 0.0
        %418 = vmatpush1.msra.mxu0 %v278
        %419 = vmatprep.subr.mxu0 0.0
        %420 = vmatpush1.msra.mxu0 %v279
        %421 = vmatprep.subr.mxu0 0.0
        %422 = vmatpush1.msra.mxu0 %v280
        %423 = vmatprep.subr.mxu0 0.0
        %424 = vmatpush1.msra.mxu0 %v281
        %425 = vmatprep.subr.mxu0 0.0
        %426 = vmatpush1.msra.mxu0 %v282
        %427 = vmatprep.subr.mxu0 0.0
        %428 = vmatpush1.msra.mxu0 %v283
        %429 = vmatprep.subr.mxu0 0.0
        %430 = vmatpush1.msra.mxu0 %v284
        %431 = vmatprep.subr.mxu0 0.0
        %432 = vmatpush1.msra.mxu0 %v285
        %433 = vmatprep.subr.mxu0 0.0
        %434 = vmatpush1.msra.mxu0 %v286
        %435 = vmatprep.subr.mxu0 0.0
        %436 = vmatpush1.msra.mxu0 %v287
        %437 = vmatprep.subr.mxu0 0.0
        %438 = vmatpush1.msra.mxu0 %v288
        %439 = vmatprep.mubr.f32.mxu0 %v230
        %440 = vmatmul.mubr.f32.gmra.mrb[0].mxu0 %v229
        %v441 = vpop.f32.mrb[0].mxu0
        %v442 = vadd.f32 %v360, %v441
        %v443 = vpop.f32.mrb[0].mxu0
        %444 = vmatprep.mubr.f32.mxu0 %v237
        %445 = vmatmul.mubr.f32.gmra.mrb[0].mxu0 %v236
        %v446 = vpop.f32.mrb[0].mxu0
        %v447 = vadd.f32 %v360, %v446
        %v448 = vpop.f32.mrb[0].mxu0
        %449 = vmatprep.mubr.f32.mxu0 %v244
        %450 = vmatmul.mubr.f32.gmra.mrb[0].mxu0 %v243
        %v451 = vpop.f32.mrb[0].mxu0
        %v452 = vadd.f32 %v360, %v451
        %v453 = vpop.f32.mrb[0].mxu0
        %454 = vmatprep.mubr.f32.mxu0 %v251
        %455 = vmatmul.mubr.f32.gmra.mrb[0].mxu0 %v250
        %v456 = vpop.f32.mrb[0].mxu0
        %v457 = vadd.f32 %v360, %v456
        %v458 = vpop.f32.mrb[0].mxu0
        %459 = vdwg.mxu0
        %460 = vmatprep.subr.mxu0 0.0
        %461 = vmatpush1.msra.mxu0 %v289
        %462 = vmatprep.subr.mxu0 0.0
        %463 = vmatpush1.msra.mxu0 %v290
        %464 = vmatprep.subr.mxu0 0.0
        %465 = vmatpush1.msra.mxu0 %v291
        %466 = vmatprep.subr.mxu0 0.0
        %467 = vmatpush1.msra.mxu0 %v292
        %468 = vmatprep.subr.mxu0 0.0
        %469 = vmatpush1.msra.mxu0 %v293
        %470 = vmatprep.subr.mxu0 0.0
        %471 = vmatpush1.msra.mxu0 %v294
        %472 = vmatprep.subr.mxu0 0.0
        %473 = vmatpush1.msra.mxu0 %v295
        %474 = vmatprep.subr.mxu0 0.0
        %475 = vmatpush1.msra.mxu0 %v296
        %476 = vmatprep.subr.mxu0 0.0
        %477 = vmatpush1.msra.mxu0 %v297
        %478 = vmatprep.subr.mxu0 0.0
        %479 = vmatpush1.msra.mxu0 %v298
        %480 = vmatprep.subr.mxu0 0.0
        %481 = vmatpush1.msra.mxu0 %v299
        %482 = vmatprep.subr.mxu0 0.0
        %483 = vmatpush1.msra.mxu0 %v300
        %484 = vmatprep.subr.mxu0 0.0
        %485 = vmatpush1.msra.mxu0 %v301
        %486 = vmatprep.subr.mxu0 0.0
        %487 = vmatpush1.msra.mxu0 %v302
        %488 = vmatprep.subr.mxu0 0.0
        %489 = vmatpush1.msra.mxu0 %v303
        %490 = vmatprep.subr.mxu0 0.0
        %491 = vmatpush1.msra.mxu0 %v304
        %492 = vmatprep.subr.mxu0 0.0
        %493 = vmatpush1.msra.mxu0 %v305
        %494 = vmatprep.subr.mxu0 0.0
        %495 = vmatpush1.msra.mxu0 %v306
        %496 = vmatprep.subr.mxu0 0.0
        %497 = vmatpush1.msra.mxu0 %v307
        %498 = vmatprep.subr.mxu0 0.0
        %499 = vmatpush1.msra.mxu0 %v308
        %500 = vmatprep.subr.mxu0 0.0
        %501 = vmatpush1.msra.mxu0 %v309
        %502 = vmatprep.subr.mxu0 0.0
        %503 = vmatpush1.msra.mxu0 %v310
        %504 = vmatprep.subr.mxu0 0.0
        %505 = vmatpush1.msra.mxu0 %v311
        %506 = vmatprep.subr.mxu0 0.0
        %507 = vmatpush1.msra.mxu0 %v312
        %508 = vmatprep.subr.mxu0 0.0
        %509 = vmatpush1.msra.mxu0 %v313
        %510 = vmatprep.subr.mxu0 0.0
        %511 = vmatpush1.msra.mxu0 %v314
        %512 = vmatprep.subr.mxu0 0.0
        %513 = vmatpush1.msra.mxu0 %v315
        %514 = vmatprep.subr.mxu0 0.0
        %515 = vmatpush1.msra.mxu0 %v316
        %516 = vmatprep.subr.mxu0 0.0
        %517 = vmatpush1.msra.mxu0 %v317
        %518 = vmatprep.subr.mxu0 0.0
        %519 = vmatpush1.msra.mxu0 %v318
        %520 = vmatprep.subr.mxu0 0.0
        %521 = vmatpush1.msra.mxu0 %v319
        %522 = vmatprep.subr.mxu0 0.0
        %523 = vmatpush1.msra.mxu0 %v320
        %524 = vmatprep.mubr.f32.mxu0 %v232
        %525 = vmatmul.mubr.f32.gmra.mrb[0].mxu0 %v231
        %v526 = vpop.f32.mrb[0].mxu0
        %v527 = vadd.f32 %v442, %v526
        %v528 = vpop.f32.mrb[0].mxu0
        %529 = vmatprep.mubr.f32.mxu0 %v239
        %530 = vmatmul.mubr.f32.gmra.mrb[0].mxu0 %v238
        %v531 = vpop.f32.mrb[0].mxu0
        %v532 = vadd.f32 %v447, %v531
        %v533 = vpop.f32.mrb[0].mxu0
        %534 = vmatprep.mubr.f32.mxu0 %v246
        %535 = vmatmul.mubr.f32.gmra.mrb[0].mxu0 %v245
        %v536 = vpop.f32.mrb[0].mxu0
        %v537 = vadd.f32 %v452, %v536
        %v538 = vpop.f32.mrb[0].mxu0
        %539 = vmatprep.mubr.f32.mxu0 %v253
        %540 = vmatmul.mubr.f32.gmra.mrb[0].mxu0 %v252
        %v541 = vpop.f32.mrb[0].mxu0
        %v542 = vadd.f32 %v457, %v541
        %v543 = vpop.f32.mrb[0].mxu0
        %544 = vdwg.mxu0
        %545 = vmatprep.subr.mxu0 0.0
        %546 = vmatpush1.msra.mxu0 %v321
        %547 = vmatprep.subr.mxu0 0.0
        %548 = vmatpush1.msra.mxu0 %v322
        %549 = vmatprep.subr.mxu0 0.0
        %550 = vmatpush1.msra.mxu0 %v323
        %551 = vmatprep.subr.mxu0 0.0
        %552 = vmatpush1.msra.mxu0 %v324
        %553 = vmatprep.subr.mxu0 0.0
        %554 = vmatpush1.msra.mxu0 %v325
        %555 = vmatprep.subr.mxu0 0.0
        %556 = vmatpush1.msra.mxu0 %v326
        %557 = vmatprep.subr.mxu0 0.0
        %558 = vmatpush1.msra.mxu0 %v327
        %559 = vmatprep.subr.mxu0 0.0
        %560 = vmatpush1.msra.mxu0 %v328
        %561 = vmatprep.subr.mxu0 0.0
        %562 = vmatpush1.msra.mxu0 %v329
        %563 = vmatprep.subr.mxu0 0.0
        %564 = vmatpush1.msra.mxu0 %v330
        %565 = vmatprep.subr.mxu0 0.0
        %566 = vmatpush1.msra.mxu0 %v331
        %567 = vmatprep.subr.mxu0 0.0
        %568 = vmatpush1.msra.mxu0 %v332
        %569 = vmatprep.subr.mxu0 0.0
        %570 = vmatpush1.msra.mxu0 %v333
        %571 = vmatprep.subr.mxu0 0.0
        %572 = vmatpush1.msra.mxu0 %v334
        %573 = vmatprep.subr.mxu0 0.0
        %574 = vmatpush1.msra.mxu0 %v335
        %575 = vmatprep.subr.mxu0 0.0
        %576 = vmatpush1.msra.mxu0 %v336
        %577 = vmatprep.subr.mxu0 0.0
        %578 = vmatpush1.msra.mxu0 %v337
        %579 = vmatprep.subr.mxu0 0.0
        %580 = vmatpush1.msra.mxu0 %v338
        %581 = vmatprep.subr.mxu0 0.0
        %582 = vmatpush1.msra.mxu0 %v339
        %583 = vmatprep.subr.mxu0 0.0
        %584 = vmatpush1.msra.mxu0 %v340
        %585 = vmatprep.subr.mxu0 0.0
        %586 = vmatpush1.msra.mxu0 %v341
        %587 = vmatprep.subr.mxu0 0.0
        %588 = vmatpush1.msra.mxu0 %v342
        %589 = vmatprep.subr.mxu0 0.0
        %590 = vmatpush1.msra.mxu0 %v343
        %591 = vmatprep.subr.mxu0 0.0
        %592 = vmatpush1.msra.mxu0 %v344
        %593 = vmatprep.subr.mxu0 0.0
        %594 = vmatpush1.msra.mxu0 %v345
        %595 = vmatprep.subr.mxu0 0.0
        %596 = vmatpush1.msra.mxu0 %v346
        %597 = vmatprep.subr.mxu0 0.0
        %598 = vmatpush1.msra.mxu0 %v347
        %599 = vmatprep.subr.mxu0 0.0
        %600 = vmatpush1.msra.mxu0 %v348
        %601 = vmatprep.subr.mxu0 0.0
        %602 = vmatpush1.msra.mxu0 %v349
        %603 = vmatprep.subr.mxu0 0.0
        %604 = vmatpush1.msra.mxu0 %v350
        %605 = vmatprep.subr.mxu0 0.0
        %606 = vmatpush1.msra.mxu0 %v351
        %607 = vmatprep.subr.mxu0 0.0
        %608 = vmatpush1.msra.mxu0 %v352
        %609 = vmatprep.mubr.f32.mxu0 %v234
        %610 = vmatmul.mubr.f32.gmra.mrb[0].mxu0 %v233
        %v611 = vpop.f32.mrb[0].mxu0
        %v612 = vadd.f32 %v527, %v611
        %v613 = vpop.f32.mrb[0].mxu0
        %614 = vmatprep.mubr.f32.mxu0 %v241
        %615 = vmatmul.mubr.f32.gmra.mrb[0].mxu0 %v240
        %v616 = vpop.f32.mrb[0].mxu0
        %v617 = vadd.f32 %v532, %v616
        %v618 = vpop.f32.mrb[0].mxu0
        %619 = vmatprep.mubr.f32.mxu0 %v248
        %620 = vmatmul.mubr.f32.gmra.mrb[0].mxu0 %v247
        %v621 = vpop.f32.mrb[0].mxu0
        %v622 = vadd.f32 %v537, %v621
        %v623 = vpop.f32.mrb[0].mxu0
        %624 = vmatprep.mubr.f32.mxu0 %v255
        %625 = vmatmul.mubr.f32.gmra.mrb[0].mxu0 %v254
        %v626 = vpop.f32.mrb[0].mxu0
        %v627 = vadd.f32 %v542, %v626
        %v628 = vpop.f32.mrb[0].mxu0
        %629 = vdwg.mxu0
        %630 = vmatprep.subr.mxu0 0.0
        %631 = vmatpush1.msra.mxu0 %v353
        %632 = vmatprep.subr.mxu0 0.0
        %633 = vmatpush1.msra.mxu0 %v354
        %634 = vmatprep.subr.mxu0 0.0
        %635 = vmatpush1.msra.mxu0 0.0
        %636 = vmatprep.subr.mxu0 0.0
        %637 = vmatpush1.msra.mxu0 0.0
        %638 = vmatprep.subr.mxu0 0.0
        %639 = vmatpush1.msra.mxu0 0.0
        %640 = vmatprep.subr.mxu0 0.0
        %641 = vmatpush1.msra.mxu0 0.0
        %642 = vmatprep.subr.mxu0 0.0
        %643 = vmatpush1.msra.mxu0 0.0
        %644 = vmatprep.subr.mxu0 0.0
        %645 = vmatpush1.msra.mxu0 0.0
        %646 = vmatprep.subr.mxu0 0.0
        %647 = vmatpush1.msra.mxu0 0.0
        %648 = vmatprep.subr.mxu0 0.0
        %649 = vmatpush1.msra.mxu0 0.0
        %650 = vmatprep.subr.mxu0 0.0
        %651 = vmatpush1.msra.mxu0 0.0
        %652 = vmatprep.subr.mxu0 0.0
        %653 = vmatpush1.msra.mxu0 0.0
        %654 = vmatprep.subr.mxu0 0.0
        %655 = vmatpush1.msra.mxu0 0.0
        %656 = vmatprep.subr.mxu0 0.0
        %657 = vmatpush1.msra.mxu0 0.0
        %658 = vmatprep.subr.mxu0 0.0
        %659 = vmatpush1.msra.mxu0 0.0
        %660 = vmatprep.subr.mxu0 0.0
        %661 = vmatpush1.msra.mxu0 0.0
        %662 = vmatprep.subr.mxu0 0.0
        %663 = vmatpush1.msra.mxu0 0.0
        %664 = vmatprep.subr.mxu0 0.0
        %665 = vmatpush1.msra.mxu0 0.0
        %666 = vmatprep.subr.mxu0 0.0
        %667 = vmatpush1.msra.mxu0 0.0
        %668 = vmatprep.subr.mxu0 0.0
        %669 = vmatpush1.msra.mxu0 0.0
        %670 = vmatprep.subr.mxu0 0.0
        %671 = vmatpush1.msra.mxu0 0.0
        %672 = vmatprep.subr.mxu0 0.0
        %673 = vmatpush1.msra.mxu0 0.0
        %674 = vmatprep.subr.mxu0 0.0
        %675 = vmatpush1.msra.mxu0 0.0
        %676 = vmatprep.subr.mxu0 0.0
        %677 = vmatpush1.msra.mxu0 0.0
        %678 = vmatprep.subr.mxu0 0.0
        %679 = vmatpush1.msra.mxu0 0.0
        %680 = vmatprep.subr.mxu0 0.0
        %681 = vmatpush1.msra.mxu0 0.0
        %682 = vmatprep.subr.mxu0 0.0
        %683 = vmatpush1.msra.mxu0 0.0
        %684 = vmatprep.subr.mxu0 0.0
        %685 = vmatpush1.msra.mxu0 0.0
        %686 = vmatprep.subr.mxu0 0.0
        %687 = vmatpush1.msra.mxu0 0.0
        %688 = vmatprep.subr.mxu0 0.0
        %689 = vmatpush1.msra.mxu0 0.0
        %690 = vmatprep.subr.mxu0 0.0
        %691 = vmatpush1.msra.mxu0 0.0
        %692 = vmatprep.subr.mxu0 0.0
        %693 = vmatpush1.msra.mxu0 0.0
        %694 = vmatprep.mubr.f32.mxu0 0.0
        %695 = vmatmul.mubr.f32.gmra.mrb[0].mxu0 %v364
        %v696 = vpop.f32.mrb[0].mxu0
        %v697 = vadd.f32 %v612, %v696
        %v698 = vpop.f32.mrb[0].mxu0
        %699 = vmatprep.mubr.f32.mxu0 0.0
        %700 = vmatmul.mubr.f32.gmra.mrb[0].mxu0 %v367
        %v701 = vpop.f32.mrb[0].mxu0
        %v702 = vadd.f32 %v617, %v701
        %v703 = vpop.f32.mrb[0].mxu0
        %704 = vmatprep.mubr.f32.mxu0 0.0
        %705 = vmatmul.mubr.f32.gmra.mrb[0].mxu0 %v370
        %v706 = vpop.f32.mrb[0].mxu0
        %v707 = vadd.f32 %v622, %v706
        %v708 = vpop.f32.mrb[0].mxu0
        %709 = vmatprep.mubr.f32.mxu0 0.0
        %710 = vmatmul.mubr.f32.gmra.mrb[0].mxu0 %v373
        %v711 = vpop.f32.mrb[0].mxu0
        %v712 = vadd.f32 %v627, %v711
        %v713 = vpop.f32.mrb[0].mxu0
        %714 = vdwg.mxu0
        %v715 = vmax.f32 %v697, 0.0
        %v716 = vmax.f32 %v702, 0.0
        %v717 = vmax.f32 %v707, 0.0
        %v718 = vmax.f32 %v712, 0.0
        %v719 = vld [vmem:[%s3] sm:$0xff]
        %v720 = vld [vmem:[%s3 + $0x8] sm:$0xff]
        %v721 = vld [vmem:[%s3 + $0x10] sm:$0xff]
        %v722 = vld [vmem:[%s3 + $0x18] sm:$0xff]
        %v723 = vld [vmem:[%s3 + $0x20] sm:$0xff]
        %v724 = vld [vmem:[%s3 + $0x28] sm:$0xff]
        %v725 = vld [vmem:[%s3 + $0x30] sm:$0xff]
        %v726 = vld [vmem:[%s3 + $0x38] sm:$0xff]
        %v727 = vld [vmem:[%s4] sm:$0x1]
        %v729 = vlaneseq
        %v730 = vshrl.u32 %v729, 7
        %v731 = vsub.s32 0, %v730
        %v732 = vrot.slane %v727, %v731
        %vm734 = vcmask 523264
        %v736 = vsel %vm734, %v715, 0
        %v739 = vsel %vm734, %v716, 0
        %v742 = vsel %vm734, %v717, 0
        %v745 = vsel %vm734, %v718, 0
        %747 = vmatprep.subr.mxu0 0.0
        %748 = vmatpush1.msra.mxu0 %v719
        %749 = vmatprep.subr.mxu0 0.0
        %750 = vmatpush1.msra.mxu0 %v720
        %751 = vmatprep.subr.mxu0 0.0
        %752 = vmatpush1.msra.mxu0 %v721
        %753 = vmatprep.subr.mxu0 0.0
        %754 = vmatpush1.msra.mxu0 %v722
        %755 = vmatprep.subr.mxu0 0.0
        %756 = vmatpush1.msra.mxu0 %v723
        %757 = vmatprep.subr.mxu0 0.0
        %758 = vmatpush1.msra.mxu0 %v724
        %759 = vmatprep.subr.mxu0 0.0
        %760 = vmatpush1.msra.mxu0 %v725
        %761 = vmatprep.subr.mxu0 0.0
        %762 = vmatpush1.msra.mxu0 %v726
        %763 = vmatprep.subr.mxu0 0.0
        %764 = vmatpush1.msra.mxu0 0.0
        %765 = vmatprep.subr.mxu0 0.0
        %766 = vmatpush1.msra.mxu0 0.0
        %767 = vmatprep.subr.mxu0 0.0
        %768 = vmatpush1.msra.mxu0 0.0
        %769 = vmatprep.subr.mxu0 0.0
        %770 = vmatpush1.msra.mxu0 0.0
        %771 = vmatprep.subr.mxu0 0.0
        %772 = vmatpush1.msra.mxu0 0.0
        %773 = vmatprep.subr.mxu0 0.0
        %774 = vmatpush1.msra.mxu0 0.0
        %775 = vmatprep.subr.mxu0 0.0
        %776 = vmatpush1.msra.mxu0 0.0
        %777 = vmatprep.subr.mxu0 0.0
        %778 = vmatpush1.msra.mxu0 0.0
        %779 = vmatprep.subr.mxu0 0.0
        %780 = vmatpush1.msra.mxu0 0.0
        %781 = vmatprep.subr.mxu0 0.0
        %782 = vmatpush1.msra.mxu0 0.0
        %783 = vmatprep.subr.mxu0 0.0
        %784 = vmatpush1.msra.mxu0 0.0
        %785 = vmatprep.subr.mxu0 0.0
        %786 = vmatpush1.msra.mxu0 0.0
        %787 = vmatprep.subr.mxu0 0.0
        %788 = vmatpush1.msra.mxu0 0.0
        %789 = vmatprep.subr.mxu0 0.0
        %790 = vmatpush1.msra.mxu0 0.0
        %791 = vmatprep.subr.mxu0 0.0
        %792 = vmatpush1.msra.mxu0 0.0
        %793 = vmatprep.subr.mxu0 0.0
        %794 = vmatpush1.msra.mxu0 0.0
        %795 = vmatprep.subr.mxu0 0.0
        %796 = vmatpush1.msra.mxu0 0.0
        %797 = vmatprep.subr.mxu0 0.0
        %798 = vmatpush1.msra.mxu0 0.0
        %799 = vmatprep.subr.mxu0 0.0
        %800 = vmatpush1.msra.mxu0 0.0
        %801 = vmatprep.subr.mxu0 0.0
        %802 = vmatpush1.msra.mxu0 0.0
        %803 = vmatprep.subr.mxu0 0.0
        %804 = vmatpush1.msra.mxu0 0.0
        %805 = vmatprep.subr.mxu0 0.0
        %806 = vmatpush1.msra.mxu0 0.0
        %807 = vmatprep.subr.mxu0 0.0
        %808 = vmatpush1.msra.mxu0 0.0
        %809 = vmatprep.subr.mxu0 0.0
        %810 = vmatpush1.msra.mxu0 0.0
        %811 = vmatprep.mubr.f32.mxu0 0.0
        %812 = vmatmul.mubr.f32.gmra.mrb[0].mxu0 %v736
        %v813 = vpop.f32.mrb[0].mxu0
        %v814 = vadd.f32 %v732, %v813
        %v815 = vpop.f32.mrb[0].mxu0
        %816 = vmatprep.mubr.f32.mxu0 0.0
        %817 = vmatmul.mubr.f32.gmra.mrb[0].mxu0 %v739
        %v818 = vpop.f32.mrb[0].mxu0
        %v819 = vadd.f32 %v732, %v818
        %v820 = vpop.f32.mrb[0].mxu0
        %821 = vmatprep.mubr.f32.mxu0 0.0
        %822 = vmatmul.mubr.f32.gmra.mrb[0].mxu0 %v742
        %v823 = vpop.f32.mrb[0].mxu0
        %v824 = vadd.f32 %v732, %v823
        %v825 = vpop.f32.mrb[0].mxu0
        %826 = vmatprep.mubr.f32.mxu0 0.0
        %827 = vmatmul.mubr.f32.gmra.mrb[0].mxu0 %v745
        %v828 = vpop.f32.mrb[0].mxu0
        %v829 = vadd.f32 %v732, %v828
        %v830 = vpop.f32.mrb[0].mxu0
        %831 = vdwg.mxu0
        %832 = vst [vmem:[%s220] sm:$0xff] %v814
        %833 = vst [vmem:[%s220 + $0x8] sm:$0xff] %v819
        %834 = vst [vmem:[%s220 + $0x10] sm:$0xff] %v824
        %835 = vst [vmem:[%s220 + $0x18] sm:$0xff] %v829
        %s836 = sand.u32 %s137, 1
        %s837 = scalar_lea.sflag [#allocation3], %s836
        %s838 = sand.u32 %s137, 1
        %s839 = smul.addr %s838, 32
        %s840 = scalar_lea.vmem [#allocation2], %s839
        // Predicated region
        $region41: #{nn_forward.1} parent=39 // pred_check
          %p841 = pneg %p147
        $region42: #{nn_forward.1} parent=39 // pred_check_branch
          %843 = sbr.rel (%p841) target = $region44
        $region43: #{nn_forward.1} parent=39 // pred_region
          %s844 = smul.u32 4, %s19
          %s846 = ssub.s32 512, 512
          %847 = vsyncadd %s837, %s846
          %s848 = smul.addr %s844, 128
          %s849 = scalar_lea.hbm %s5, %s848
          %s850 = sshll.u32 %s840, 4
          %s851 = int_to_ptr.vmem [resolvable:$true] %s850
          %856 = dma.vmem_to_hbm [thread:$0]  %s851, 512, %s849, %s837, 128, 128, 8
        $region44: #{nn_forward.1} parent=39 // pred_fallthru
          _
      $region40: #{nn_forward.1} parent=5 // pred_fallthru
        _
      %p857 = scmp.le.s32.totalorder 2, %s14
      // Predicated region
      $region45: #{nn_forward.1} parent=5 // pred_check
        %p858 = pneg %p857
      $region46: #{nn_forward.1} parent=5 // pred_check_branch
        %860 = sbr.rel (%p858) target = $region48
      $region47: #{nn_forward.1} parent=5 // pred_region
        %s861 = ssub.s32 %s14, 2
        // Predicated region
        $region49: #{nn_forward.1} parent=47 // pred_check
          %p862 = pneg %p153
        $region50: #{nn_forward.1} parent=47 // pred_check_branch
          %864 = sbr.rel (%p862) target = $region52
        $region51: #{nn_forward.1} parent=47 // pred_region
          %s865 = sand.u32 %s138, 1
          %s866 = scalar_lea.sflag [#allocation3], %s865
          %s867 = sand.u32 %s138, 1
          %s868 = smul.addr %s867, 32
          %s869 = scalar_lea.vmem [#allocation2], %s868
          %870 = dma.done %s866, 512
        $region52: #{nn_forward.1} parent=47 // pred_fallthru
          _
      $region48: #{nn_forward.1} parent=5 // pred_fallthru
        _
    $region6: #{nn_forward.1} parent=1 // loop_footer
      %s18 = sadd.s32 1, %s14
    $region7: #{nn_forward.1} parent=1 // loop_footer_branch
      %13 = sbr.rel target = $region3
    $region8: #{nn_forward.1} parent=1 // loop_exit
      _
    %871 = vsyncpa [#allocation3], 1
    %s872 = scalar_lea.sflag [#allocation3], 1
    %873 = vsyncpa %s872, 1

</llo_original>
